<compile_context>
chip_gen: v5e
topology: v5e:2x2
jax: 0.10.0
libtpu: 0.0.40
codegen_flags: <defaults>
</compile_context>

<pallas_src>
import functools
import math

import jax
import jax.numpy as jnp
from jax.experimental import pallas as pl
from jax.experimental.pallas import tpu as pltpu

_SQRT_2_OVER_PI = math.sqrt(2.0 / math.pi)


def _gelu_tanh(x):
    # PytorchGELUTanh / NewGELU: 0.5*x*(1 + tanh(sqrt(2/pi)*(x + 0.044715*x^3)))
    return 0.5 * x * (1.0 + jnp.tanh(_SQRT_2_OVER_PI * (x + 0.044715 * x * x * x)))


def _round_up(x, m):
    return (x + m - 1) // m * m


# ---------------------------------------------------------------------------
# Kernel
# ---------------------------------------------------------------------------
def _gemma2_mlp_kernel(x_ref, wgu_ref, wd_ref, o_ref, acc_ref):
    # grid = (num_m_tiles, num_i_tiles); axis 1 (I) carries the accumulator.
    i = pl.program_id(1)

    @pl.when(i == 0)
    def _():
        acc_ref[...] = jnp.zeros_like(acc_ref)

    # x tile loaded once per grid step, reused for both projections.
    x = x_ref[...]
    # Fused weight tile: plane 0 = gate, plane 1 = up (single DMA stream).
    gate = jnp.dot(x, wgu_ref[0], preferred_element_type=jnp.float32)
    up = jnp.dot(x, wgu_ref[1], preferred_element_type=jnp.float32)
    # Activation in f32 (tanh -> EUP, muls -> VPU; hidden behind MXU work),
    # then cast back to the storage dtype (bf16 in production) for down_proj.
    h = (_gelu_tanh(gate) * up).astype(x_ref.dtype)
    acc_ref[...] += jnp.dot(h, wd_ref[...], preferred_element_type=jnp.float32)

    @pl.when(i == pl.num_programs(1) - 1)
    def _():
        o_ref[...] = acc_ref[...].astype(o_ref.dtype)


# ---------------------------------------------------------------------------
# Tile / VMEM planning
# ---------------------------------------------------------------------------
def _device_vmem_bytes():
    """Physical VMEM of the attached TPU; conservative (v7x-sized) fallback."""
    try:
        info = pltpu.get_tpu_info()
        for attr in ("vmem_capacity_bytes", "vmem_bytes", "vmem_size_bytes"):
            v = getattr(info, attr, None)
            if v:
                return int(v)
    except Exception:
        pass
    return 64 << 20


def _vmem_need_bytes(tm, ti, H, x_bytes, w_bytes):
    return (
        2 * tm * H * x_bytes          # x row tile (double-buffered)
        + 2 * 2 * H * ti * w_bytes    # fused gate+up weight tile (double-buffered)
        + 2 * ti * H * w_bytes        # down weight tile (double-buffered)
        + 2 * tm * H * x_bytes        # output tile (double-buffered)
        + tm * H * 4                  # f32 accumulator scratch
        + 4 * tm * ti * 4             # compiler-managed f32 gate/up/gelu/h intermediates
    )


def _select_tiles(M, H, I, x_bytes, w_bytes, vmem_budget):
    """Largest (tm, ti) that fits the VMEM budget; tm preferred (weight reuse)."""
    m_ceil = _round_up(max(M, 1), 8)
    tm_cands = sorted(
        {c for c in (1024, 512, 256, 128, 64, 32, 16, 8, min(m_ceil, 1024))
         if c <= m_ceil} | {8},
        reverse=True)
    ti_cands = [c for c in (2048, 1024, 512, 256, 128) if c <= I and I % c == 0]
    if not ti_cands:
        ti_cands = [I]
    for tm in tm_cands:
        for ti in ti_cands:
            if _vmem_need_bytes(tm, ti, H, x_bytes, w_bytes) <= vmem_budget:
                return tm, ti
    return 8, ti_cands[-1]


# ---------------------------------------------------------------------------
# Weight prep (one-time, at load — NOT per forward)
# ---------------------------------------------------------------------------
def prepare_gemma2_mlp_weights(w_gate, w_up, w_down, dtype=None):
    """Layout/dtype conversion done once at weight-load time.

    nn.Linear stores (out_features, in_features):
      w_gate, w_up: (I, H);  w_down: (H, I).
    Returns:
      wgu:  (2, H, I_pad)  fused [gate; up], transposed for row-major x @ W
      wd_t: (I_pad, H)     down_proj transposed
    I is zero-padded to a multiple of 128 (exact: padded up-columns are 0, so
    h=gelu(gate)*0=0 and the padded I rows of wd_t are 0 anyway).
    """
    w_gate = jnp.asarray(w_gate)
    w_up = jnp.asarray(w_up)
    w_down = jnp.asarray(w_down)
    if dtype is not None:
        w_gate = w_gate.astype(dtype)
        w_up = w_up.astype(dtype)
        w_down = w_down.astype(dtype)
    I, H = w_gate.shape
    pad = _round_up(I, 128) - I
    wg_t, wu_t, wd_t = w_gate.T, w_up.T, w_down.T       # (H,I), (H,I), (I,H)
    if pad:
        wg_t = jnp.pad(wg_t, ((0, 0), (0, pad)))
        wu_t = jnp.pad(wu_t, ((0, 0), (0, pad)))
        wd_t = jnp.pad(wd_t, ((0, pad), (0, 0)))
    wgu = jnp.stack([wg_t, wu_t], axis=0)                # (2, H, I_pad)
    return wgu, wd_t


# ---------------------------------------------------------------------------
# Forward
# ---------------------------------------------------------------------------
@functools.partial(jax.jit, static_argnames=("tm", "ti", "vmem_limit"))
def _gemma2_mlp_call(x2d, wgu, wd_t, *, tm, ti, vmem_limit):
    M, H = x2d.shape
    I = wgu.shape[2]
    M_pad = _round_up(M, tm)
    if M_pad != M:
        x2d = jnp.pad(x2d, ((0, M_pad - M), (0, 0)))     # padded rows -> zeros out
    grid = (M_pad // tm, I // ti)

    x_bytes = x2d.dtype.itemsize
    w_bytes = wgu.dtype.itemsize
    cost = pl.CostEstimate(
        flops=int(6 * M * H * I),
        transcendentals=int(M * I),
        bytes_accessed=int(
            2 * M_pad * H * x_bytes                      # x read + out write
            + grid[0] * 3 * H * I * w_bytes),            # weights re-read per m-tile
    )

    out2d = pl.pallas_call(
        _gemma2_mlp_kernel,
        out_shape=jax.ShapeDtypeStruct((M_pad, H), x2d.dtype),
        grid_spec=pltpu.PrefetchScalarGridSpec(
            num_scalar_prefetch=0,
            grid=grid,
            in_specs=[
                pl.BlockSpec((tm, H), lambda m, i: (m, 0)),        # x row tile
                pl.BlockSpec((2, H, ti), lambda m, i: (0, 0, i)),  # fused gate+up tile
                pl.BlockSpec((ti, H), lambda m, i: (i, 0)),        # down weight tile
            ],
            out_specs=pl.BlockSpec((tm, H), lambda m, i: (m, 0)),  # resident over I
            scratch_shapes=[pltpu.VMEM((tm, H), jnp.float32)],
        ),
        compiler_params=pltpu.CompilerParams(
            dimension_semantics=("parallel", "arbitrary"),
            vmem_limit_bytes=vmem_limit,
        ),
        cost_estimate=cost,
    )(x2d, wgu, wd_t)

    return out2d[:M] if M_pad != M else out2d


def gemma2_mlp(x, wgu, wd_t, *, tm=None, ti=None):
    """Gemma2MLP forward.

    x:    (B, S, H)
    wgu:  (2, H, I_pad)  from prepare_gemma2_mlp_weights
    wd_t: (I_pad, H)
    Returns (B, S, H) in x.dtype.
    """
    B, S, H = x.shape
    I = wgu.shape[2]
    M = B * S
    x2d = x.reshape(M, H)

    x_bytes = x.dtype.itemsize
    w_bytes = wgu.dtype.itemsize
    vmem_cap = _device_vmem_bytes()
    budget = (vmem_cap * 3) // 4                         # leave room for Mosaic scratch
    tm_sel, ti_sel = _select_tiles(M, H, I, x_bytes, w_bytes, budget)
    if tm is None:
        tm = tm_sel
    if ti is None:
        ti = ti_sel

    need = _vmem_need_bytes(tm, ti, H, x_bytes, w_bytes)
    # Clamp to physical VMEM minus headroom (v7x = 64 MiB; v5e/v6e = 128 MiB).
    vmem_limit = int(min(max(int(need * 1.2) + (4 << 20), 32 << 20),
                         vmem_cap - (2 << 20)))

    out2d = _gemma2_mlp_call(x2d, wgu, wd_t, tm=int(tm), ti=int(ti),
                             vmem_limit=vmem_limit)
    return out2d.reshape(B, S, H)


# ---------------------------------------------------------------------------
# Reference + self-test
# ---------------------------------------------------------------------------
def _reference(x, w_gate, w_up, w_down):
    gate = jnp.einsum("bsh,ih->bsi", x, w_gate)
    up = jnp.einsum("bsh,ih->bsi", x, w_up)
    h = _gelu_tanh(gate) * up
    return jnp.einsum("bsi,hi->bsh", h, w_down)


if __name__ == "__main__":
    B, S, H, I = 2, 8, 32, 64  # batch, seq, hidden_size, intermediate_size

    key = jax.random.PRNGKey(0)
    kx, kg, ku, kd = jax.random.split(key, 4)
    x = jax.random.normal(kx, (B, S, H), dtype=jnp.float32)
    # nn.Linear weight shapes are (out_features, in_features).
    w_gate = jax.random.normal(kg, (I, H), dtype=jnp.float32) * 0.05
    w_up = jax.random.normal(ku, (I, H), dtype=jnp.float32) * 0.05
    w_down = jax.random.normal(kd, (H, I), dtype=jnp.float32) * 0.05

    # --- f32 path: tight correctness check against the reference ---
    wgu, wd_t = prepare_gemma2_mlp_weights(w_gate, w_up, w_down)
    out = gemma2_mlp(x, wgu, wd_t)
    jax.block_until_ready(out)

    ref = _reference(x, w_gate, w_up, w_down)
    assert out.shape == (B, S, H)
    assert jnp.allclose(out, ref, atol=1e-4, rtol=1e-4), "f32 mismatch vs reference"

    # --- bf16 path (production dtype): compare against a bf16-weight reference ---
    x_bf = x.astype(jnp.bfloat16)
    wgu_b, wd_b = prepare_gemma2_mlp_weights(w_gate, w_up, w_down, dtype=jnp.bfloat16)
    out_bf = gemma2_mlp(x_bf, wgu_b, wd_b)
    jax.block_until_ready(out_bf)

    ref_bf = _reference(
        x_bf.astype(jnp.float32),
        w_gate.astype(jnp.bfloat16).astype(jnp.float32),
        w_up.astype(jnp.bfloat16).astype(jnp.float32),
        w_down.astype(jnp.bfloat16).astype(jnp.float32),
    )
    assert jnp.allclose(out_bf.astype(jnp.float32), ref_bf, atol=2e-2, rtol=2e-2), \
        "bf16 mismatch vs reference"

    print("KERNEL_OK")
</pallas_src>

<mosaic_0001>
module attributes {stable_mosaic.version = 11 : i64} {
  func.func @_gemma2_mlp_kernel(%arg0: i32, %arg1: i32, %arg2: memref<16x32xf32, #tpu.memory_space<vmem>>, %arg3: memref<2x32x128xf32, #tpu.memory_space<vmem>>, %arg4: memref<128x32xf32, #tpu.memory_space<vmem>>, %arg5: memref<16x32xf32, #tpu.memory_space<vmem>>, %arg6: memref<16x32xf32, #tpu.memory_space<vmem>>) attributes {dimension_semantics = [#tpu.dimension_semantics<parallel>, #tpu.dimension_semantics<arbitrary>], iteration_bounds = array<i64: 1, 1>, scalar_prefetch = 0 : i64, scratch_operands = 1 : i64, tpu.core_type = #tpu.core_type<tc>, window_params = [{transform_indices = @transform_0, window_bounds = array<i64: 16, 32>}, {transform_indices = @transform_1, window_bounds = array<i64: 2, 32, 128>}, {transform_indices = @transform_2, window_bounds = array<i64: 128, 32>}, {transform_indices = @transform_3, window_bounds = array<i64: 16, 32>}]} {
    %c0_i32 = arith.constant 0 : i32
    %0 = arith.cmpi eq, %arg1, %c0_i32 : i32
    %1 = arith.extui %0 : i1 to i32
    %c0_i32_0 = arith.constant 0 : i32
    %2 = arith.cmpi ne, %1, %c0_i32_0 : i32
    scf.if %2 {
      %cst_21 = arith.constant 0.000000e+00 : f32
      %32 = vector.broadcast %cst_21 : f32 to vector<16x32xf32>
      %c0_22 = arith.constant 0 : index
      %c0_23 = arith.constant 0 : index
      %33 = vector.load %arg6[%c0_22, %c0_23] : memref<16x32xf32, #tpu.memory_space<vmem>>, vector<16x32xf32>
      tpu.vector_store %arg6[%c0_22, %c0_23], %32 {strides = array<i32>} : memref<16x32xf32, #tpu.memory_space<vmem>>, vector<16x32xf32>,
    } else {
    }
    %c0 = arith.constant 0 : index
    %c0_1 = arith.constant 0 : index
    %3 = vector.load %arg2[%c0, %c0_1] : memref<16x32xf32, #tpu.memory_space<vmem>>, vector<16x32xf32>
    %c0_2 = arith.constant 0 : index
    %c0_3 = arith.constant 0 : index
    %c0_4 = arith.constant 0 : index
    %4 = vector.load %arg3[%c0_2, %c0_3, %c0_4] : memref<2x32x128xf32, #tpu.memory_space<vmem>>, vector<1x32x128xf32>
    %5 = vector.shape_cast %4 : vector<1x32x128xf32> to vector<32x128xf32>
    %cst = arith.constant dense<0.000000e+00> : vector<16x128xf32>
    %6 = tpu.matmul %3, %5, %cst {dimension_numbers = #tpu.dot_dimension_numbers<[1], [0], [0], [1], [0, 0, 1, 1], [], []>} : vector<16x32xf32>, vector<32x128xf32>, vector<16x128xf32> -> vector<16x128xf32>
    %c1 = arith.constant 1 : index
    %c0_5 = arith.constant 0 : index
    %c0_6 = arith.constant 0 : index
    %7 = vector.load %arg3[%c1, %c0_5, %c0_6] : memref<2x32x128xf32, #tpu.memory_space<vmem>>, vector<1x32x128xf32>
    %8 = vector.shape_cast %7 : vector<1x32x128xf32> to vector<32x128xf32>
    %cst_7 = arith.constant dense<0.000000e+00> : vector<16x128xf32>
    %9 = tpu.matmul %3, %8, %cst_7 {dimension_numbers = #tpu.dot_dimension_numbers<[1], [0], [0], [1], [0, 0, 1, 1], [], []>} : vector<16x32xf32>, vector<32x128xf32>, vector<16x128xf32> -> vector<16x128xf32>
    %cst_8 = arith.constant 5.000000e-01 : f32
    %10 = vector.broadcast %cst_8 : f32 to vector<16x128xf32>
    %11 = arith.mulf %10, %6 : vector<16x128xf32>
    %cst_9 = arith.constant 4.471500e-02 : f32
    %12 = vector.broadcast %cst_9 : f32 to vector<16x128xf32>
    %13 = arith.mulf %12, %6 : vector<16x128xf32>
    %14 = arith.mulf %13, %6 : vector<16x128xf32>
    %15 = arith.mulf %14, %6 : vector<16x128xf32>
    %16 = arith.addf %6, %15 : vector<16x128xf32>
    %cst_10 = arith.constant 0.797884583 : f32
    %17 = vector.broadcast %cst_10 : f32 to vector<16x128xf32>
    %18 = arith.mulf %17, %16 : vector<16x128xf32>
    %19 = math.tanh %18 : vector<16x128xf32>
    %cst_11 = arith.constant 1.000000e+00 : f32
    %20 = vector.broadcast %cst_11 : f32 to vector<16x128xf32>
    %21 = arith.addf %20, %19 : vector<16x128xf32>
    %22 = arith.mulf %11, %21 : vector<16x128xf32>
    %23 = arith.mulf %22, %9 : vector<16x128xf32>
    %c0_12 = arith.constant 0 : index
    %c0_13 = arith.constant 0 : index
    %24 = vector.load %arg6[%c0_12, %c0_13] : memref<16x32xf32, #tpu.memory_space<vmem>>, vector<16x32xf32>
    %c0_14 = arith.constant 0 : index
    %c0_15 = arith.constant 0 : index
    %25 = vector.load %arg4[%c0_14, %c0_15] : memref<128x32xf32, #tpu.memory_space<vmem>>, vector<128x32xf32>
    %cst_16 = arith.constant dense<0.000000e+00> : vector<16x32xf32>
    %26 = tpu.matmul %23, %25, %cst_16 {dimension_numbers = #tpu.dot_dimension_numbers<[1], [0], [0], [1], [0, 0, 1, 1], [], []>} : vector<16x128xf32>, vector<128x32xf32>, vector<16x32xf32> -> vector<16x32xf32>
    %27 = arith.addf %24, %26 : vector<16x32xf32>
    %c0_17 = arith.constant 0 : index
    %c0_18 = arith.constant 0 : index
    %28 = vector.load %arg6[%c0_17, %c0_18] : memref<16x32xf32, #tpu.memory_space<vmem>>, vector<16x32xf32>
    tpu.vector_store %arg6[%c0_17, %c0_18], %27 {strides = array<i32>} : memref<16x32xf32, #tpu.memory_space<vmem>>, vector<16x32xf32>,
    %c0_i32_19 = arith.constant 0 : i32
    %29 = arith.cmpi eq, %arg1, %c0_i32_19 : i32
    %30 = arith.extui %29 : i1 to i32
    %c0_i32_20 = arith.constant 0 : i32
    %31 = arith.cmpi ne, %30, %c0_i32_20 : i32
    scf.if %31 {
      %c0_21 = arith.constant 0 : index
      %c0_22 = arith.constant 0 : index
      %32 = vector.load %arg6[%c0_21, %c0_22] : memref<16x32xf32, #tpu.memory_space<vmem>>, vector<16x32xf32>
      %c0_23 = arith.constant 0 : index
      %c0_24 = arith.constant 0 : index
      %33 = vector.load %arg5[%c0_23, %c0_24] : memref<16x32xf32, #tpu.memory_space<vmem>>, vector<16x32xf32>
      tpu.vector_store %arg5[%c0_23, %c0_24], %32 {strides = array<i32>} : memref<16x32xf32, #tpu.memory_space<vmem>>, vector<16x32xf32>,
    } else {
    }
    return
  }
  func.func @transform_0(%arg0: i32, %arg1: i32) -> (i32, i32) {
    %c0_i32 = arith.constant 0 : i32
    %c0_i32_0 = arith.constant 0 : i32
    return %arg0, %c0_i32 : i32, i32
  }
  func.func @transform_1(%arg0: i32, %arg1: i32) -> (i32, i32, i32) {
    %c0_i32 = arith.constant 0 : i32
    %c0_i32_0 = arith.constant 0 : i32
    %c0_i32_1 = arith.constant 0 : i32
    return %c0_i32, %c0_i32_0, %arg1 : i32, i32, i32
  }
  func.func @transform_2(%arg0: i32, %arg1: i32) -> (i32, i32) {
    %c0_i32 = arith.constant 0 : i32
    %c0_i32_0 = arith.constant 0 : i32
    return %arg1, %c0_i32 : i32, i32
  }
  func.func @transform_3(%arg0: i32, %arg1: i32) -> (i32, i32) {
    %c0_i32 = arith.constant 0 : i32
    %c0_i32_0 = arith.constant 0 : i32
    return %arg0, %c0_i32 : i32, i32
  }
}

</mosaic_0001>

<llo_original>
// kernel: _gemma2_mlp_call.1
$region0: #{_gemma2_mlp_call.1}
  #allocation0 [shape = 'u32[]', space=smem, size = 0x4, offset = 0x4, fixed_abs, tag = 'smem constant byte address 0x4 - core index']
  #allocation1 [shape = 'u32[72,128]{1,0:T(1,128)}', space=vmem, size = 0x9000, scoped, tag = 'internal scratch']
  #allocation2 [shape = 'f32[16,32]{1,0:T(8,128)}', space=vmem, size = 0x2000, scoped, tag = 'scratch operand']
  %s0 = inlined_call_operand.vmem [shape: f32[16,32], index: 0, kind: input, shape index: {}]
  %s1 = inlined_call_operand.vmem [shape: f32[2,32,128], index: 1, kind: input, shape index: {}]
  %s2 = inlined_call_operand.vmem [shape: f32[128,32], index: 2, kind: input, shape index: {}]
  %s3 = inlined_call_operand.hbm [shape: f32[16,32], index: 3, kind: output, shape index: {}]
  %s4 = sld [smem:[#allocation0]]
  $region30: #{_gemma2_mlp_call.1} parent=0
    _
  %s6 = ssub.s32 1, %s4
  %s7 = scalar_select 0, %s6, %s4
  $region1: #{_gemma2_mlp_call.1} parent=0
    #allocation3 [shape = 'u8[8192]{0}', space=vmem, size = 0x2000, scoped, tag = 'output window, operand 0, single buffered']
    #allocation4 [shape = 's32[1]{0}', space=sflag, size = 0x4, scoped, tag = 'scoped memory for _gemma2_mlp_call.1']
    %8 = vsyncpa [#allocation4], 0
    // Predicated region
    $region2: #{_gemma2_mlp_call.1} parent=1 // pred_check
      _
    $region3: #{_gemma2_mlp_call.1} parent=1 // pred_check_branch
      %10 = sbr.rel (0) target = $region5
    $region4: #{_gemma2_mlp_call.1} parent=1 // pred_region
      _
    $region5: #{_gemma2_mlp_call.1} parent=1 // pred_fallthru
      _
    // Predicated region
    $region6: #{_gemma2_mlp_call.1} parent=1 // pred_check
      _
    $region7: #{_gemma2_mlp_call.1} parent=1 // pred_check_branch
      %12 = sbr.rel (0) target = $region9
    $region8: #{_gemma2_mlp_call.1} parent=1 // pred_region
      _
    $region9: #{_gemma2_mlp_call.1} parent=1 // pred_fallthru
      _
    // Predicated region
    $region10: #{_gemma2_mlp_call.1} parent=1 // pred_check
      _
    $region11: #{_gemma2_mlp_call.1} parent=1 // pred_check_branch
      %14 = sbr.rel (0) target = $region13
    $region12: #{_gemma2_mlp_call.1} parent=1 // pred_region
      _
    $region13: #{_gemma2_mlp_call.1} parent=1 // pred_fallthru
      _
    %p15 = scmp.eq.s32.totalorder 0, 0
    // Predicated region
    $region14: #{_gemma2_mlp_call.1} parent=1 // pred_check
      %p16 = pneg %p15
    $region15: #{_gemma2_mlp_call.1} parent=1 // pred_check_branch
      %18 = sbr.rel (%p16) target = $region17
    $region16: #{_gemma2_mlp_call.1} parent=1 // pred_region
      %vm19 = vcmask 261120
      %20 = vst.msk [vmem:[#allocation2] sm:$0xff] %vm19, 0.0
      %21 = vst.msk [vmem:[#allocation2 + $0x8] sm:$0xff] %vm19, 0.0
    $region17: #{_gemma2_mlp_call.1} parent=1 // pred_fallthru
      _
    %v22 = vld [vmem:[%s0] sm:$0xff]
    %v23 = vld [vmem:[%s0 + $0x8] sm:$0xff]
    %v24 = vld [vmem:[%s1] sm:$0xff]
    %v25 = vld [vmem:[%s1 + $0x8] sm:$0xff]
    %v26 = vld [vmem:[%s1 + $0x10] sm:$0xff]
    %v27 = vld [vmem:[%s1 + $0x18] sm:$0xff]
    %vm28 = vcmask 261120
    %v30 = vsel %vm28, %v22, 0
    %v33 = vsel %vm28, %v23, 0
    %35 = vmatpush.msra.mxu0 0.0
    %36 = vmatpush.msra.mxu0 0.0
    %37 = vmatpush.msra.mxu0 0.0
    %38 = vmatpush.msra.mxu0 0.0
    %39 = vmatpush.msra.mxu0 0.0
    %40 = vmatpush.msra.mxu0 0.0
    %41 = vmatpush.msra.mxu0 0.0
    %42 = vmatpush.msra.mxu0 0.0
    %43 = vmatpush.msra.mxu0 0.0
    %44 = vmatpush.msra.mxu0 0.0
    %45 = vmatpush.msra.mxu0 0.0
    %46 = vmatpush.msra.mxu0 0.0
    %47 = vmatpush.msra.mxu0 %v27
    %48 = vmatpush.msra.mxu0 %v26
    %49 = vmatpush.msra.mxu0 %v25
    %50 = vmatpush.msra.mxu0 %v24
    %51 = vmatmul.f32.gmra.mxu0 %v30
    %v52 = vpop.f32.mrf.mxu0
    %v53 = vadd.f32 0.0, %v52
    %54 = vmatmul.f32.gmra.mxu0 %v33
    %v55 = vpop.f32.mrf.mxu0
    %v56 = vadd.f32 0.0, %v55
    %57 = vdwg.mxu0
    %s58 = scalar_lea.vmem %s1, 32
    %v59 = vld [vmem:[%s58] sm:$0xff]
    %v60 = vld [vmem:[%s58 + $0x8] sm:$0xff]
    %v61 = vld [vmem:[%s58 + $0x10] sm:$0xff]
    %v62 = vld [vmem:[%s58 + $0x18] sm:$0xff]
    %63 = vmatpush.msra.mxu0 0.0
    %64 = vmatpush.msra.mxu0 0.0
    %65 = vmatpush.msra.mxu0 0.0
    %66 = vmatpush.msra.mxu0 0.0
    %67 = vmatpush.msra.mxu0 0.0
    %68 = vmatpush.msra.mxu0 0.0
    %69 = vmatpush.msra.mxu0 0.0
    %70 = vmatpush.msra.mxu0 0.0
    %71 = vmatpush.msra.mxu0 0.0
    %72 = vmatpush.msra.mxu0 0.0
    %73 = vmatpush.msra.mxu0 0.0
    %74 = vmatpush.msra.mxu0 0.0
    %75 = vmatpush.msra.mxu0 %v62
    %76 = vmatpush.msra.mxu0 %v61
    %77 = vmatpush.msra.mxu0 %v60
    %78 = vmatpush.msra.mxu0 %v59
    %79 = vmatmul.f32.gmra.mxu0 %v30
    %v80 = vpop.f32.mrf.mxu0
    %v81 = vadd.f32 0.0, %v80
    %82 = vmatmul.f32.gmra.mxu0 %v33
    %v83 = vpop.f32.mrf.mxu0
    %v84 = vadd.f32 0.0, %v83
    %85 = vdwg.mxu0
    %v86 = vmul.f32 %v53, 0.5
    %v87 = vmul.f32 %v56, 0.5
    %v88 = vmul.f32 %v53, 0.044715
    %v89 = vmul.f32 %v56, 0.044715
    %v90 = vmul.f32 %v88, %v53
    %v91 = vmul.f32 %v89, %v56
    %v92 = vmul.f32 %v90, %v53
    %v93 = vmul.f32 %v91, %v56
    %v94 = vadd.f32 %v53, %v92
    %v95 = vadd.f32 %v56, %v93
    %v96 = vmul.f32 %v94, 0.7978846
    %v97 = vmul.f32 %v95, 0.7978846
    %v98 = vtanh.pop %v96
    %v99 = vtanh.pop %v97
    %v100 = vadd.f32 %v98, 1.0
    %v101 = vadd.f32 %v99, 1.0
    %v102 = vmul.f32 %v86, %v100
    %v103 = vmul.f32 %v87, %v101
    %v104 = vmul.f32 %v102, %v81
    %v105 = vmul.f32 %v103, %v84
    %v106 = vld [vmem:[#allocation2] sm:$0xff]
    %v107 = vld [vmem:[#allocation2 + $0x8] sm:$0xff]
    %v108 = vld [vmem:[%s2] sm:$0xff]
    %v109 = vld [vmem:[%s2 + $0x8] sm:$0xff]
    %v110 = vld [vmem:[%s2 + $0x10] sm:$0xff]
    %v111 = vld [vmem:[%s2 + $0x18] sm:$0xff]
    %v112 = vld [vmem:[%s2 + $0x20] sm:$0xff]
    %v113 = vld [vmem:[%s2 + $0x28] sm:$0xff]
    %v114 = vld [vmem:[%s2 + $0x30] sm:$0xff]
    %v115 = vld [vmem:[%s2 + $0x38] sm:$0xff]
    %v116 = vld [vmem:[%s2 + $0x40] sm:$0xff]
    %v117 = vld [vmem:[%s2 + $0x48] sm:$0xff]
    %v118 = vld [vmem:[%s2 + $0x50] sm:$0xff]
    %v119 = vld [vmem:[%s2 + $0x58] sm:$0xff]
    %v120 = vld [vmem:[%s2 + $0x60] sm:$0xff]
    %v121 = vld [vmem:[%s2 + $0x68] sm:$0xff]
    %v122 = vld [vmem:[%s2 + $0x70] sm:$0xff]
    %v123 = vld [vmem:[%s2 + $0x78] sm:$0xff]
    %124 = vmatpush.msra.mxu0 %v123
    %125 = vmatpush.msra.mxu0 %v122
    %126 = vmatpush.msra.mxu0 %v121
    %127 = vmatpush.msra.mxu0 %v120
    %128 = vmatpush.msra.mxu0 %v119
    %129 = vmatpush.msra.mxu0 %v118
    %130 = vmatpush.msra.mxu0 %v117
    %131 = vmatpush.msra.mxu0 %v116
    %132 = vmatpush.msra.mxu0 %v115
    %133 = vmatpush.msra.mxu0 %v114
    %134 = vmatpush.msra.mxu0 %v113
    %135 = vmatpush.msra.mxu0 %v112
    %136 = vmatpush.msra.mxu0 %v111
    %137 = vmatpush.msra.mxu0 %v110
    %138 = vmatpush.msra.mxu0 %v109
    %139 = vmatpush.msra.mxu0 %v108
    %140 = vmatmul.f32.gmra.mxu0 %v104
    %v141 = vpop.f32.mrf.mxu0
    %v142 = vadd.f32 0.0, %v141
    %143 = vmatmul.f32.gmra.mxu0 %v105
    %v144 = vpop.f32.mrf.mxu0
    %v145 = vadd.f32 0.0, %v144
    %146 = vdwg.mxu0
    %v147 = vadd.f32 %v106, %v142
    %v148 = vadd.f32 %v107, %v145
    %149 = vst.msk [vmem:[#allocation2] sm:$0xff] %vm28, %v147
    %150 = vst.msk [vmem:[#allocation2 + $0x8] sm:$0xff] %vm28, %v148
    // Predicated region
    $region18: #{_gemma2_mlp_call.1} parent=1 // pred_check
      %p151 = pneg %p15
    $region19: #{_gemma2_mlp_call.1} parent=1 // pred_check_branch
      %153 = sbr.rel (%p151) target = $region21
    $region20: #{_gemma2_mlp_call.1} parent=1 // pred_region
      %v154 = vld [vmem:[#allocation2] sm:$0xff]
      %v155 = vld [vmem:[#allocation2 + $0x8] sm:$0xff]
      %156 = vst.msk [vmem:[#allocation3] sm:$0xff] %vm28, %v154
      %157 = vst.msk [vmem:[#allocation3 + $0x8] sm:$0xff] %vm28, %v155
    $region21: #{_gemma2_mlp_call.1} parent=1 // pred_fallthru
      _
    // Predicated region
    $region22: #{_gemma2_mlp_call.1} parent=1 // pred_check
      _
    $region23: #{_gemma2_mlp_call.1} parent=1 // pred_check_branch
      %159 = sbr.rel (0) target = $region25
    $region24: #{_gemma2_mlp_call.1} parent=1 // pred_region
      %161 = vsyncadd [#allocation4], 0
      %s162 = sshll.u32 [#allocation3], 4
      %s163 = int_to_ptr.vmem [resolvable:$true] %s162
      %s164 = sshll.u32 %s3, 4
      %s165 = int_to_ptr.hbm [resolvable:$true] %s164
      %170 = dma.vmem_to_hbm [thread:$0]  %s163, 256, %s165, [#allocation4], 128, 128, 8
    $region25: #{_gemma2_mlp_call.1} parent=1 // pred_fallthru
      _
    // Predicated region
    $region26: #{_gemma2_mlp_call.1} parent=1 // pred_check
      _
    $region27: #{_gemma2_mlp_call.1} parent=1 // pred_check_branch
      %172 = sbr.rel (0) target = $region29
    $region28: #{_gemma2_mlp_call.1} parent=1 // pred_region
      %174 = dma.done [#allocation4], 256
    $region29: #{_gemma2_mlp_call.1} parent=1 // pred_fallthru
      _
    %175 = vsyncpa [#allocation4], 1

</llo_original>
